<compile_context>
chip_gen: v7x
topology: tpu7x:2x2x1
jax: 0.10.0
libtpu: 0.0.40
codegen_flags: <defaults>
</compile_context>

<pallas_src>
import functools

import jax
import jax.numpy as jnp
from jax.experimental import pallas as pl
from jax.experimental.pallas import tpu as pltpu


_LANE = 128
_SUBLANE = 8

# Fused-path VMEM budget: estimate (with 2x buffering on every operand) must
# stay under 32 MiB; scoped limit set to 48 MiB which leaves >=16 MiB headroom
# even on v7x's 64 MiB physical VMEM (v5e/v6e have 128 MiB physical).
_FUSED_VMEM_BUDGET = 32 * 1024 * 1024
_FUSED_VMEM_LIMIT = 48 * 1024 * 1024


def _round_up(x, m):
    return ((x + m - 1) // m) * m


def _pad2d(a, shape):
    pads = [(0, t - s) for s, t in zip(a.shape, shape)]
    if all(p == (0, 0) for p in pads):
        return a
    return jnp.pad(a, pads)  # zero padding is numerically exact for matmul


def _pick_tile(dim, tmax):
    """Largest multiple-of-128 divisor of `dim` (a 128-multiple) that is <= tmax.

    Choosing an exact divisor after rounding `dim` to 128 avoids over-padding
    (e.g. K=640 is never padded to 1024)."""
    best = min(_LANE, dim)
    t = _LANE
    while t <= min(tmax, dim):
        if dim % t == 0:
            best = t
        t += _LANE
    return best


# ----------------------------------------------------------------------------
# 1) Small path: single-shot fused kernel (no grid).
# ----------------------------------------------------------------------------
def _re_fused_small_kernel(x_ref, wcol_ref, wrow_ref, o_ref):
    tmp = jnp.dot(x_ref[...], wcol_ref[...], preferred_element_type=jnp.float32)
    out = jnp.dot(wrow_ref[...], tmp, preferred_element_type=jnp.float32)
    o_ref[...] = out.astype(o_ref.dtype)


def _forward_small(x, w_col, w_row):
    R, C = x.shape
    nbytes = jnp.dtype(x.dtype).itemsize
    cost = pl.CostEstimate(
        flops=2 * R * C * C + 2 * R * R * C,
        bytes_accessed=nbytes * (R * C + C * C + R * R + R * C),
        transcendentals=0,
    )
    return pl.pallas_call(
        _re_fused_small_kernel,
        out_shape=jax.ShapeDtypeStruct((R, C), x.dtype),
        in_specs=[
            pl.BlockSpec(memory_space=pltpu.MemorySpace.VMEM),
            pl.BlockSpec(memory_space=pltpu.MemorySpace.VMEM),
            pl.BlockSpec(memory_space=pltpu.MemorySpace.VMEM),
        ],
        out_specs=pl.BlockSpec(memory_space=pltpu.MemorySpace.VMEM),
        cost_estimate=cost,
    )(x, w_col, w_row)


# ----------------------------------------------------------------------------
# 2) Fused panel path: one pallas_call, tmp stays in VMEM (f32).
# ----------------------------------------------------------------------------
def _re_fused_panel_kernel(x_ref, wcol_ref, wrow_ref, o_ref):
    # tmp panel = X @ W_col[:, j*tn:(j+1)*tn]  -> (Rp, tn), f32 on the MXU.
    tmp = jnp.dot(x_ref[...], wcol_ref[...], preferred_element_type=jnp.float32)
    # If W_row was kept in f32 (default) this is a no-op and the intermediate
    # is consumed at full f32 precision; only an explicit full-bf16 opt-in
    # rounds it down.
    tmp = tmp.astype(wrow_ref.dtype)
    o_ref[...] = jnp.dot(
        wrow_ref[...], tmp, preferred_element_type=jnp.float32
    ).astype(o_ref.dtype)


def _forward_fused_panel(x_p, wcol_p, wrow_p, out_dtype, tn):
    Rp, Cp = x_p.shape
    nj = Cp // tn
    xb = jnp.dtype(x_p.dtype).itemsize
    wb = jnp.dtype(wrow_p.dtype).itemsize
    ob = jnp.dtype(out_dtype).itemsize
    cost = pl.CostEstimate(
        flops=2 * Rp * Cp * Cp + 2 * Rp * Rp * Cp,
        # X and W_row are DMA'd once (constant block index); W_col / out stream.
        bytes_accessed=xb * (Rp * Cp + Cp * Cp) + wb * Rp * Rp + ob * Rp * Cp,
        transcendentals=0,
    )
    return pl.pallas_call(
        _re_fused_panel_kernel,
        out_shape=jax.ShapeDtypeStruct((Rp, Cp), out_dtype),
        grid_spec=pltpu.PrefetchScalarGridSpec(
            num_scalar_prefetch=0,
            grid=(nj,),
            in_specs=[
                # X: full array, constant block index -> resident, DMA'd once.
                pl.BlockSpec((Rp, Cp), lambda j: (0, 0)),
                # W_col column panel, streamed per grid step (lane-dense).
                pl.BlockSpec((Cp, tn), lambda j: (0, j)),
                # W_row: full array, resident.
                pl.BlockSpec((Rp, Rp), lambda j: (0, 0)),
            ],
            out_specs=pl.BlockSpec((Rp, tn), lambda j: (0, j)),
        ),
        compiler_params=pltpu.CompilerParams(
            # j-panels are independent; with tn <= Cp//2 both v7x TCs get work.
            dimension_semantics=("parallel",),
            vmem_limit_bytes=_FUSED_VMEM_LIMIT,
        ),
        cost_estimate=cost,
    )(x_p, wcol_p, wrow_p)


def _fused_vmem_bytes(Rp, Cp, tn, xb, wb, ob):
    # Conservative: count 2x buffering for every pipelined operand plus the
    # f32 tmp panel the compiler materializes.
    return (2 * Rp * Cp * xb          # X (resident)
            + 2 * Cp * tn * xb        # W_col panel (double-buffered)
            + 2 * Rp * Rp * wb        # W_row (resident)
            + 2 * Rp * tn * ob        # out panel (double-buffered)
            + Rp * tn * 4)            # f32 tmp panel


# ----------------------------------------------------------------------------
# 3) Fallback: two pipelined tiled matmuls (very large shapes only).
# ----------------------------------------------------------------------------
def _matmul_kernel(a_ref, b_ref, o_ref, acc_ref):
    @pl.when(pl.program_id(2) == 0)
    def _():
        acc_ref[...] = jnp.zeros_like(acc_ref)

    acc_ref[...] += jnp.dot(
        a_ref[...], b_ref[...], preferred_element_type=jnp.float32
    )

    @pl.when(pl.program_id(2) == pl.num_programs(2) - 1)
    def _():
        o_ref[...] = acc_ref[...].astype(o_ref.dtype)


def _matmul_tiled(a, b, *, tm=512, tn=512, tk=512, out_dtype=None):
    """out = a @ b, tiled over (M//tm, N//tn, K//tk) with an f32 accumulator."""
    M, K = a.shape
    Kb, N = b.shape
    assert K == Kb
    out_dtype = a.dtype if out_dtype is None else out_dtype

    # Round dims to the 128-lane granule FIRST, then pick tiles that divide the
    # rounded dims exactly -> no over-padding beyond the 128 granule.
    Mp, Np, Kp = (_round_up(d, _LANE) for d in (M, N, K))
    tm = _pick_tile(Mp, tm)
    tn = _pick_tile(Np, tn)
    tk = _pick_tile(Kp, tk)
    # Megacore: ensure >=2 parallel (i, j) blocks so both v7x TCs get work.
    if (Mp // tm) * (Np // tn) < 2:
        if Mp >= Np and Mp >= 2 * _LANE:
            tm = _pick_tile(Mp, Mp // 2)
        elif Np >= 2 * _LANE:
            tn = _pick_tile(Np, Np // 2)
    gi, gj, gk = Mp // tm, Np // tn, Kp // tk

    a_p = _pad2d(a, (Mp, Kp))
    b_p = _pad2d(b, (Kp, Np))

    ab = jnp.dtype(a.dtype).itemsize
    bb = jnp.dtype(b.dtype).itemsize
    ob = jnp.dtype(out_dtype).itemsize
    # Re-read-aware HBM traffic: A is streamed once per output column block,
    # B once per output row block.
    cost = pl.CostEstimate(
        flops=2 * Mp * Np * Kp,
        bytes_accessed=ab * Mp * Kp * gj + bb * Kp * Np * gi + ob * Mp * Np,
        transcendentals=0,
    )

    # Explicit VMEM limit so large-tile configs are safe on v5e's 16 MiB /
    # v7x's 32 MiB default scoped limits (2x headroom over the estimate).
    vmem_est = 2 * (tm * tk * ab + tk * tn * bb) + 2 * tm * tn * ob + tm * tn * 4
    vmem_limit = min(max(2 * vmem_est, 16 * 1024 * 1024), _FUSED_VMEM_LIMIT)

    out_p = pl.pallas_call(
        _matmul_kernel,
        out_shape=jax.ShapeDtypeStruct((Mp, Np), out_dtype),
        grid_spec=pltpu.PrefetchScalarGridSpec(
            num_scalar_prefetch=0,
            grid=(gi, gj, gk),
            in_specs=[
                # If profiling shows exposed K-step DMA (likely once bf16 halves
                # per-tile compute), add pipeline_mode=pl.Buffered(3) here and
                # re-check the VMEM budget on v7x.
                pl.BlockSpec((tm, tk), lambda i, j, k: (i, k)),
                pl.BlockSpec((tk, tn), lambda i, j, k: (k, j)),
            ],
            out_specs=pl.BlockSpec((tm, tn), lambda i, j, k: (i, j)),
            scratch_shapes=[pltpu.VMEM((tm, tn), jnp.float32)],
        ),
        compiler_params=pltpu.CompilerParams(
            dimension_semantics=("parallel", "parallel", "arbitrary"),
            vmem_limit_bytes=vmem_limit,
        ),
        cost_estimate=cost,
    )(a_p, b_p)

    if (Mp, Np) != (M, N):
        out_p = out_p[:M, :N]
    return out_p


# ----------------------------------------------------------------------------
# Public forward.
# ----------------------------------------------------------------------------
@functools.partial(
    jax.jit,
    static_argnames=("compute_dtype", "preserve_f32_intermediate", "force_path"),
)
def re_neural_network_forward(
    x, w_col, w_row, *,
    compute_dtype=jnp.bfloat16,            # bf16 MXU inputs on v5e/v6e/v7x
    preserve_f32_intermediate=True,        # keep tmp = X @ W_col in f32
    force_path=None,                       # None | "small" | "fused" | "tiled"
):
    """Computes W_row @ (x @ W_col) with Pallas TPU kernels."""
    R, C = x.shape
    assert w_col.shape == (C, C)
    assert w_row.shape == (R, R)
    out_dtype = x.dtype

    # ---- 1) Tiny problems: single-shot grid-less kernel in the input dtype.
    small_ws = 4 * (2 * R * C + C * C + R * R)
    use_small = (force_path == "small") or (
        force_path is None and max(R, C) <= 256 and small_ws <= 2 * 1024 * 1024)
    if use_small:
        return _forward_small(x, w_col, w_row)

    # ---- Compute-dtype casts. The MXU is bf16-native on v5e/v6e/v7x; f32
    # inputs run multi-pass, so bf16 is the default. W_row (and therefore the
    # intermediate consumed by the second matmul) stays f32 by default so the
    # in-VMEM tmp panel is never re-rounded (only the 2nd matmul pays f32 rate).
    cdt = jnp.dtype(compute_dtype)
    x_c = x.astype(cdt)
    wcol_c = w_col.astype(cdt)
    wrow_dtype = (jnp.dtype(jnp.float32)
                  if (preserve_f32_intermediate and cdt != jnp.dtype(jnp.float32))
                  else cdt)
    wrow_c = w_row.astype(wrow_dtype)

    # ---- 2) Fused single-kernel path: tmp never touches HBM.
    Rp = _round_up(R, _SUBLANE)
    Cp = _round_up(C, _LANE)
    tn = _pick_tile(Cp, min(512, Cp // 2 if Cp >= 2 * _LANE else Cp))
    xb = cdt.itemsize
    wb = jnp.dtype(wrow_dtype).itemsize
    ob = jnp.dtype(out_dtype).itemsize
    fused_vmem = _fused_vmem_bytes(Rp, Cp, tn, xb, wb, ob)
    use_fused = (force_path == "fused") or (
        force_path is None and fused_vmem <= _FUSED_VMEM_BUDGET)
    if use_fused:
        x_p = _pad2d(x_c, (Rp, Cp))
        wcol_p = _pad2d(wcol_c, (Cp, Cp))
        wrow_p = _pad2d(wrow_c, (Rp, Rp))
        out_p = _forward_fused_panel(x_p, wcol_p, wrow_p, out_dtype, tn)
        if (Rp, Cp) != (R, C):
            out_p = out_p[:R, :C]
        return out_p

    # ---- 3) Fallback for very large shapes: two pipelined tiled matmuls.
    # The intermediate makes one HBM round-trip (in f32 when
    # preserve_f32_intermediate, otherwise in compute_dtype).
    tmp_dtype = jnp.float32 if wrow_dtype == jnp.dtype(jnp.float32) else cdt
    tmp = _matmul_tiled(x_c, wcol_c, out_dtype=tmp_dtype)
    out = _matmul_tiled(wrow_c, tmp, out_dtype=out_dtype)
    return out

    # TODO(synk): if W_col / W_row are reused across many calls, pin them via a
    # cross-call VMEM prefetch (P10) instead of re-DMAing every invocation.


if __name__ == "__main__":
    key = jax.random.PRNGKey(0)
    kx, kc, kr = jax.random.split(key, 3)

    # --- 1) Module-scale shapes (matrix_row=16, matrix_column=32): small path.
    R, C = 16, 32
    x = jax.random.normal(kx, (R, C), dtype=jnp.float32)
    # __init__ uses identity; reset_parameters() uses U[0,1). Use the latter so
    # the compute path is non-trivial.
    w_col = jax.random.uniform(kc, (C, C), dtype=jnp.float32)
    w_row = jax.random.uniform(kr, (R, R), dtype=jnp.float32)

    out = jax.block_until_ready(re_neural_network_forward(x, w_col, w_row))
    ref = jnp.matmul(
        w_row,
        jnp.matmul(x, w_col, precision=jax.lax.Precision.HIGHEST),
        precision=jax.lax.Precision.HIGHEST,
    )
    assert out.shape == (R, C)
    assert jnp.allclose(out, ref, atol=1e-4, rtol=1e-4), "small-path mismatch"

    # --- 2) Fused single-kernel path, exact f32 compute.
    R2, C2 = 256, 384
    x2 = jax.random.normal(kx, (R2, C2), dtype=jnp.float32)
    w_col2 = jax.random.uniform(kc, (C2, C2), dtype=jnp.float32)
    w_row2 = jax.random.uniform(kr, (R2, R2), dtype=jnp.float32)
    ref2 = jnp.matmul(
        w_row2,
        jnp.matmul(x2, w_col2, precision=jax.lax.Precision.HIGHEST),
        precision=jax.lax.Precision.HIGHEST,
    )
    out2 = jax.block_until_ready(
        re_neural_network_forward(
            x2, w_col2, w_row2, compute_dtype=jnp.float32, force_path="fused"))
    assert out2.shape == (R2, C2)
    assert jnp.allclose(out2, ref2, atol=1e-2, rtol=1e-3), "fused f32 mismatch"

    # --- 3) Default path: bf16 MXU inputs, f32 intermediate kept in VMEM.
    #        Compare against a reference with the same bf16 input rounding.
    out3 = jax.block_until_ready(re_neural_network_forward(x2, w_col2, w_row2))
    ref3 = jnp.matmul(
        w_row2,
        jnp.matmul(x2.astype(jnp.bfloat16).astype(jnp.float32),
                   w_col2.astype(jnp.bfloat16).astype(jnp.float32),
                   precision=jax.lax.Precision.HIGHEST),
        precision=jax.lax.Precision.HIGHEST,
    )
    assert out3.shape == (R2, C2)
    assert jnp.allclose(out3, ref3, atol=1e-2, rtol=1e-3), "fused bf16 mismatch"
    assert jnp.allclose(out3, ref2, atol=4.0, rtol=5e-2), "bf16 vs f32 drift"

    # --- 4) Exercise the large-shape fallback (two tiled matmuls) as well.
    out4 = jax.block_until_ready(
        re_neural_network_forward(
            x2, w_col2, w_row2, compute_dtype=jnp.float32, force_path="tiled"))
    assert out4.shape == (R2, C2)
    assert jnp.allclose(out4, ref2, atol=1e-2, rtol=1e-3), "tiled-path mismatch"

    # TODO(synk): constraint_loss() (binarize + reductions) and
    # get_inverse_matrix() (matrix inverse) are not part of forward() and are
    # left out of the kernels.

    print("KERNEL_OK")
</pallas_src>

<mosaic_0001>
module attributes {stable_mosaic.version = 11 : i64} {
  func.func @_re_fused_small_kernel(%arg0: memref<16x32xf32, #tpu.memory_space<vmem>>, %arg1: memref<32x32xf32, #tpu.memory_space<vmem>>, %arg2: memref<16x16xf32, #tpu.memory_space<vmem>>, %arg3: memref<16x32xf32, #tpu.memory_space<vmem>>) attributes {dimension_semantics = [], scalar_prefetch = 0 : i64, scratch_operands = 0 : i64, tpu.core_type = #tpu.core_type<tc>} {
    %c0 = arith.constant 0 : index
    %c0_0 = arith.constant 0 : index
    %0 = vector.load %arg0[%c0, %c0_0] : memref<16x32xf32, #tpu.memory_space<vmem>>, vector<16x32xf32>
    %c0_1 = arith.constant 0 : index
    %c0_2 = arith.constant 0 : index
    %1 = vector.load %arg1[%c0_1, %c0_2] : memref<32x32xf32, #tpu.memory_space<vmem>>, vector<32x32xf32>
    %cst = arith.constant dense<0.000000e+00> : vector<16x32xf32>
    %2 = tpu.matmul %0, %1, %cst {dimension_numbers = #tpu.dot_dimension_numbers<[1], [0], [0], [1], [0, 0, 1, 1], [], []>} : vector<16x32xf32>, vector<32x32xf32>, vector<16x32xf32> -> vector<16x32xf32>
    %c0_3 = arith.constant 0 : index
    %c0_4 = arith.constant 0 : index
    %3 = vector.load %arg2[%c0_3, %c0_4] : memref<16x16xf32, #tpu.memory_space<vmem>>, vector<16x16xf32>
    %cst_5 = arith.constant dense<0.000000e+00> : vector<16x32xf32>
    %4 = tpu.matmul %3, %2, %cst_5 {dimension_numbers = #tpu.dot_dimension_numbers<[1], [0], [0], [1], [0, 0, 1, 1], [], []>} : vector<16x16xf32>, vector<16x32xf32>, vector<16x32xf32> -> vector<16x32xf32>
    %c0_6 = arith.constant 0 : index
    %c0_7 = arith.constant 0 : index
    %5 = vector.load %arg3[%c0_6, %c0_7] : memref<16x32xf32, #tpu.memory_space<vmem>>, vector<16x32xf32>
    tpu.vector_store %arg3[%c0_6, %c0_7], %4 {strides = array<i32>} : memref<16x32xf32, #tpu.memory_space<vmem>>, vector<16x32xf32>,
    return
  }
}

</mosaic_0001>

<llo_original>
// kernel: re_neural_network_forward.1
$region0: #{re_neural_network_forward.1}
  #allocation0 [shape = 'u32[]', space=smem, size = 0x4, offset = 0x4, fixed_abs, tag = 'smem constant byte address 0x4 - core index']
  #allocation1 [shape = 'u32[144,128]{1,0:T(1,128)}', space=vmem, size = 0x12000, scoped, tag = 'internal scratch']
  %s0 = inlined_call_operand.hbm [shape: f32[16,32], index: 0, kind: input, shape index: {}]
  %s1 = inlined_call_operand.hbm [shape: f32[32,32], index: 1, kind: input, shape index: {}]
  %s2 = inlined_call_operand.hbm [shape: f32[16,16], index: 2, kind: input, shape index: {}]
  %s3 = inlined_call_operand.hbm [shape: f32[16,32], index: 3, kind: output, shape index: {}]
  %s4 = sld [smem:[#allocation0]]
  $region34: #{re_neural_network_forward.1} parent=0
    _
  %s6 = ssub.s32 1, %s4
  %s7 = scalar_select 0, %s6, %s4
  $region1: #{re_neural_network_forward.1} parent=0
    #allocation2 [shape = 'u8[8192]{0}', space=vmem, size = 0x2000, scoped, tag = 'input window, operand 0, single buffered']
    #allocation3 [shape = 's32[1]{0}', space=sflag, size = 0x4, scoped, tag = 'scoped memory for re_neural_network_forward.1']
    #allocation4 [shape = 's32[1]{0}', space=sflag, size = 0x4, scoped, tag = 'scoped memory for re_neural_network_forward.1']
    #allocation5 [shape = 'u8[16384]{0}', space=vmem, size = 0x4000, scoped, tag = 'input window, operand 1, single buffered']
    #allocation6 [shape = 's32[1]{0}', space=sflag, size = 0x4, scoped, tag = 'scoped memory for re_neural_network_forward.1']
    #allocation7 [shape = 'u8[8192]{0}', space=vmem, size = 0x2000, scoped, tag = 'input window, operand 2, single buffered']
    #allocation8 [shape = 'u8[8192]{0}', space=vmem, size = 0x2000, scoped, tag = 'output window, operand 0, single buffered']
    %8 = vsyncpa [#allocation3], 0
    %9 = vsyncpa [#allocation6], 0
    %10 = vsyncpa [#allocation4], 0
    // Predicated region
    $region2: #{re_neural_network_forward.1} parent=1 // pred_check
      _
    $region3: #{re_neural_network_forward.1} parent=1 // pred_check_branch
      %12 = sbr.rel (0) target = $region5
    $region4: #{re_neural_network_forward.1} parent=1 // pred_region
      %s14 = ssub.s32 256, 256
      %15 = vsyncadd [#allocation3], %s14
      %s16 = sshll.u32 [#allocation2], 4
      %s17 = int_to_ptr.vmem [resolvable:$true] %s16
      %22 = dma.hbm_to_vmem [thread:$0]  %s0, 256, %s17, [#allocation3], 128, 128, 8
    $region5: #{re_neural_network_forward.1} parent=1 // pred_fallthru
      _
    // Predicated region
    $region6: #{re_neural_network_forward.1} parent=1 // pred_check
      _
    $region7: #{re_neural_network_forward.1} parent=1 // pred_check_branch
      %24 = sbr.rel (0) target = $region9
    $region8: #{re_neural_network_forward.1} parent=1 // pred_region
      %s26 = ssub.s32 512, 512
      %27 = vsyncadd [#allocation6], %s26
      %s28 = sshll.u32 [#allocation5], 4
      %s29 = int_to_ptr.vmem [resolvable:$true] %s28
      %34 = dma.hbm_to_vmem [thread:$0]  %s1, 512, %s29, [#allocation6], 128, 128, 8
    $region9: #{re_neural_network_forward.1} parent=1 // pred_fallthru
      _
    // Predicated region
    $region10: #{re_neural_network_forward.1} parent=1 // pred_check
      _
    $region11: #{re_neural_network_forward.1} parent=1 // pred_check_branch
      %36 = sbr.rel (0) target = $region13
    $region12: #{re_neural_network_forward.1} parent=1 // pred_region
      %s38 = ssub.s32 256, 256
      %39 = vsyncadd [#allocation6], %s38
      %s40 = sshll.u32 [#allocation7], 4
      %s41 = int_to_ptr.vmem [resolvable:$true] %s40
      %46 = dma.hbm_to_vmem [thread:$0]  %s2, 256, %s41, [#allocation6], 128, 128, 8
    $region13: #{re_neural_network_forward.1} parent=1 // pred_fallthru
      _
    // Predicated region
    $region14: #{re_neural_network_forward.1} parent=1 // pred_check
      _
    $region15: #{re_neural_network_forward.1} parent=1 // pred_check_branch
      %48 = sbr.rel (0) target = $region17
    $region16: #{re_neural_network_forward.1} parent=1 // pred_region
      %49 = dma.done [#allocation3], 256
    $region17: #{re_neural_network_forward.1} parent=1 // pred_fallthru
      _
    // Predicated region
    $region18: #{re_neural_network_forward.1} parent=1 // pred_check
      _
    $region19: #{re_neural_network_forward.1} parent=1 // pred_check_branch
      %51 = sbr.rel (0) target = $region21
    $region20: #{re_neural_network_forward.1} parent=1 // pred_region
      %52 = dma.done [#allocation6], 512
    $region21: #{re_neural_network_forward.1} parent=1 // pred_fallthru
      _
    // Predicated region
    $region22: #{re_neural_network_forward.1} parent=1 // pred_check
      _
    $region23: #{re_neural_network_forward.1} parent=1 // pred_check_branch
      %54 = sbr.rel (0) target = $region25
    $region24: #{re_neural_network_forward.1} parent=1 // pred_region
      %55 = dma.done [#allocation6], 256
    $region25: #{re_neural_network_forward.1} parent=1 // pred_fallthru
      _
    %v56 = vld [vmem:[#allocation2] sm:$0xff]
    %v57 = vld [vmem:[#allocation2 + $0x8] sm:$0xff]
    %v58 = vld [vmem:[#allocation5] sm:$0xff]
    %v59 = vld [vmem:[#allocation5 + $0x8] sm:$0xff]
    %v60 = vld [vmem:[#allocation5 + $0x10] sm:$0xff]
    %v61 = vld [vmem:[#allocation5 + $0x18] sm:$0xff]
    %vm62 = vcmask 261120
    %v64 = vsel %vm62, %v56, 0
    %v67 = vsel %vm62, %v57, 0
    %69 = vmatprep.subr.mxu0 0.0
    %70 = vmatpush1.msra.mxu0 %v58
    %71 = vmatprep.subr.mxu0 0.0
    %72 = vmatpush1.msra.mxu0 %v59
    %73 = vmatprep.subr.mxu0 0.0
    %74 = vmatpush1.msra.mxu0 %v60
    %75 = vmatprep.subr.mxu0 0.0
    %76 = vmatpush1.msra.mxu0 %v61
    %77 = vmatprep.subr.mxu0 0.0
    %78 = vmatpush1.msra.mxu0 0.0
    %79 = vmatprep.subr.mxu0 0.0
    %80 = vmatpush1.msra.mxu0 0.0
    %81 = vmatprep.subr.mxu0 0.0
    %82 = vmatpush1.msra.mxu0 0.0
    %83 = vmatprep.subr.mxu0 0.0
    %84 = vmatpush1.msra.mxu0 0.0
    %85 = vmatprep.subr.mxu0 0.0
    %86 = vmatpush1.msra.mxu0 0.0
    %87 = vmatprep.subr.mxu0 0.0
    %88 = vmatpush1.msra.mxu0 0.0
    %89 = vmatprep.subr.mxu0 0.0
    %90 = vmatpush1.msra.mxu0 0.0
    %91 = vmatprep.subr.mxu0 0.0
    %92 = vmatpush1.msra.mxu0 0.0
    %93 = vmatprep.subr.mxu0 0.0
    %94 = vmatpush1.msra.mxu0 0.0
    %95 = vmatprep.subr.mxu0 0.0
    %96 = vmatpush1.msra.mxu0 0.0
    %97 = vmatprep.subr.mxu0 0.0
    %98 = vmatpush1.msra.mxu0 0.0
    %99 = vmatprep.subr.mxu0 0.0
    %100 = vmatpush1.msra.mxu0 0.0
    %101 = vmatprep.subr.mxu0 0.0
    %102 = vmatpush1.msra.mxu0 0.0
    %103 = vmatprep.subr.mxu0 0.0
    %104 = vmatpush1.msra.mxu0 0.0
    %105 = vmatprep.subr.mxu0 0.0
    %106 = vmatpush1.msra.mxu0 0.0
    %107 = vmatprep.subr.mxu0 0.0
    %108 = vmatpush1.msra.mxu0 0.0
    %109 = vmatprep.subr.mxu0 0.0
    %110 = vmatpush1.msra.mxu0 0.0
    %111 = vmatprep.subr.mxu0 0.0
    %112 = vmatpush1.msra.mxu0 0.0
    %113 = vmatprep.subr.mxu0 0.0
    %114 = vmatpush1.msra.mxu0 0.0
    %115 = vmatprep.subr.mxu0 0.0
    %116 = vmatpush1.msra.mxu0 0.0
    %117 = vmatprep.subr.mxu0 0.0
    %118 = vmatpush1.msra.mxu0 0.0
    %119 = vmatprep.subr.mxu0 0.0
    %120 = vmatpush1.msra.mxu0 0.0
    %121 = vmatprep.subr.mxu0 0.0
    %122 = vmatpush1.msra.mxu0 0.0
    %123 = vmatprep.subr.mxu0 0.0
    %124 = vmatpush1.msra.mxu0 0.0
    %125 = vmatprep.subr.mxu0 0.0
    %126 = vmatpush1.msra.mxu0 0.0
    %127 = vmatprep.subr.mxu0 0.0
    %128 = vmatpush1.msra.mxu0 0.0
    %129 = vmatprep.subr.mxu0 0.0
    %130 = vmatpush1.msra.mxu0 0.0
    %131 = vmatprep.subr.mxu0 0.0
    %132 = vmatpush1.msra.mxu0 0.0
    %133 = vmatprep.mubr.f32.mxu0 0.0
    %134 = vmatmul.mubr.f32.gmra.mrb[0].mxu0 %v64
    %v135 = vpop.f32.mrb[0].mxu0
    %v136 = vadd.f32 0.0, %v135
    %v137 = vpop.f32.mrb[0].mxu0
    %138 = vmatprep.mubr.f32.mxu0 0.0
    %139 = vmatmul.mubr.f32.gmra.mrb[0].mxu0 %v67
    %v140 = vpop.f32.mrb[0].mxu0
    %v141 = vadd.f32 0.0, %v140
    %v142 = vpop.f32.mrb[0].mxu0
    %143 = vdwg.mxu0
    %v144 = vld [vmem:[#allocation7] sm:$0xff]
    %v145 = vld [vmem:[#allocation7 + $0x8] sm:$0xff]
    %vm146 = vcmask 130048
    %v148 = vsel %vm146, %v144, 0
    %v151 = vsel %vm146, %v145, 0
    %153 = vmatprep.subr.mxu0 0.0
    %154 = vmatpush1.msra.mxu0 %v136
    %155 = vmatprep.subr.mxu0 0.0
    %156 = vmatpush1.msra.mxu0 %v141
    %157 = vmatprep.subr.mxu0 0.0
    %158 = vmatpush1.msra.mxu0 0.0
    %159 = vmatprep.subr.mxu0 0.0
    %160 = vmatpush1.msra.mxu0 0.0
    %161 = vmatprep.subr.mxu0 0.0
    %162 = vmatpush1.msra.mxu0 0.0
    %163 = vmatprep.subr.mxu0 0.0
    %164 = vmatpush1.msra.mxu0 0.0
    %165 = vmatprep.subr.mxu0 0.0
    %166 = vmatpush1.msra.mxu0 0.0
    %167 = vmatprep.subr.mxu0 0.0
    %168 = vmatpush1.msra.mxu0 0.0
    %169 = vmatprep.subr.mxu0 0.0
    %170 = vmatpush1.msra.mxu0 0.0
    %171 = vmatprep.subr.mxu0 0.0
    %172 = vmatpush1.msra.mxu0 0.0
    %173 = vmatprep.subr.mxu0 0.0
    %174 = vmatpush1.msra.mxu0 0.0
    %175 = vmatprep.subr.mxu0 0.0
    %176 = vmatpush1.msra.mxu0 0.0
    %177 = vmatprep.subr.mxu0 0.0
    %178 = vmatpush1.msra.mxu0 0.0
    %179 = vmatprep.subr.mxu0 0.0
    %180 = vmatpush1.msra.mxu0 0.0
    %181 = vmatprep.subr.mxu0 0.0
    %182 = vmatpush1.msra.mxu0 0.0
    %183 = vmatprep.subr.mxu0 0.0
    %184 = vmatpush1.msra.mxu0 0.0
    %185 = vmatprep.subr.mxu0 0.0
    %186 = vmatpush1.msra.mxu0 0.0
    %187 = vmatprep.subr.mxu0 0.0
    %188 = vmatpush1.msra.mxu0 0.0
    %189 = vmatprep.subr.mxu0 0.0
    %190 = vmatpush1.msra.mxu0 0.0
    %191 = vmatprep.subr.mxu0 0.0
    %192 = vmatpush1.msra.mxu0 0.0
    %193 = vmatprep.subr.mxu0 0.0
    %194 = vmatpush1.msra.mxu0 0.0
    %195 = vmatprep.subr.mxu0 0.0
    %196 = vmatpush1.msra.mxu0 0.0
    %197 = vmatprep.subr.mxu0 0.0
    %198 = vmatpush1.msra.mxu0 0.0
    %199 = vmatprep.subr.mxu0 0.0
    %200 = vmatpush1.msra.mxu0 0.0
    %201 = vmatprep.subr.mxu0 0.0
    %202 = vmatpush1.msra.mxu0 0.0
    %203 = vmatprep.subr.mxu0 0.0
    %204 = vmatpush1.msra.mxu0 0.0
    %205 = vmatprep.subr.mxu0 0.0
    %206 = vmatpush1.msra.mxu0 0.0
    %207 = vmatprep.subr.mxu0 0.0
    %208 = vmatpush1.msra.mxu0 0.0
    %209 = vmatprep.subr.mxu0 0.0
    %210 = vmatpush1.msra.mxu0 0.0
    %211 = vmatprep.subr.mxu0 0.0
    %212 = vmatpush1.msra.mxu0 0.0
    %213 = vmatprep.subr.mxu0 0.0
    %214 = vmatpush1.msra.mxu0 0.0
    %215 = vmatprep.subr.mxu0 0.0
    %216 = vmatpush1.msra.mxu0 0.0
    %217 = vmatprep.mubr.f32.mxu0 0.0
    %218 = vmatmul.mubr.f32.gmra.mrb[0].mxu0 %v148
    %v219 = vpop.f32.mrb[0].mxu0
    %v220 = vadd.f32 0.0, %v219
    %v221 = vpop.f32.mrb[0].mxu0
    %222 = vmatprep.mubr.f32.mxu0 0.0
    %223 = vmatmul.mubr.f32.gmra.mrb[0].mxu0 %v151
    %v224 = vpop.f32.mrb[0].mxu0
    %v225 = vadd.f32 0.0, %v224
    %v226 = vpop.f32.mrb[0].mxu0
    %227 = vdwg.mxu0
    %228 = vst.msk [vmem:[#allocation8] sm:$0xff] %vm62, %v220
    %229 = vst.msk [vmem:[#allocation8 + $0x8] sm:$0xff] %vm62, %v225
    // Predicated region
    $region26: #{re_neural_network_forward.1} parent=1 // pred_check
      _
    $region27: #{re_neural_network_forward.1} parent=1 // pred_check_branch
      %231 = sbr.rel (0) target = $region29
    $region28: #{re_neural_network_forward.1} parent=1 // pred_region
      %s233 = ssub.s32 256, 256
      %234 = vsyncadd [#allocation4], %s233
      %s235 = sshll.u32 [#allocation8], 4
      %s236 = int_to_ptr.vmem [resolvable:$true] %s235
      %241 = dma.vmem_to_hbm [thread:$0]  %s236, 256, %s3, [#allocation4], 128, 128, 8
    $region29: #{re_neural_network_forward.1} parent=1 // pred_fallthru
      _
    // Predicated region
    $region30: #{re_neural_network_forward.1} parent=1 // pred_check
      _
    $region31: #{re_neural_network_forward.1} parent=1 // pred_check_branch
      %243 = sbr.rel (0) target = $region33
    $region32: #{re_neural_network_forward.1} parent=1 // pred_region
      %244 = dma.done [#allocation4], 256
    $region33: #{re_neural_network_forward.1} parent=1 // pred_fallthru
      _
    %245 = vsyncpa [#allocation3], 1
    %246 = vsyncpa [#allocation6], 1
    %247 = vsyncpa [#allocation4], 1

</llo_original>
